<compile_context>
chip_gen: v7x
topology: tpu7x:2x2x1
jax: 0.10.0
libtpu: 0.0.40
codegen_flags: <defaults>
</compile_context>

<pallas_src>
import math
from functools import lru_cache

import numpy as np
import jax
import jax.numpy as jnp
from jax.experimental import pallas as pl
from jax.experimental.pallas import tpu as pltpu


# -----------------------------------------------------------------------------
# __init__ replication: lucidrains RotaryEmbedding axial freqs (numpy, once).
# -----------------------------------------------------------------------------
def _axial_freqs(dims, offsets, base_freqs, pixel):
    """Returns freqs of shape (*dims, len(dims) * 2 * len(base_freqs))."""
    per_axis = []
    n = len(dims)
    for i, (d, off) in enumerate(zip(dims, offsets)):
        if pixel:
            pos = np.linspace(-1.0, 1.0, d, dtype=np.float64)
        else:
            pos = np.arange(d, dtype=np.float64)
        pos = pos + off
        f = pos[:, None] * base_freqs[None, :]            # (d, nf)
        f = np.repeat(f, 2, axis=-1)                      # (d, 2*nf)
        shape = [1] * n + [f.shape[-1]]
        shape[i] = d
        per_axis.append(f.reshape(shape))
    out = [np.broadcast_to(f, list(dims) + [f.shape[-1]]) for f in per_axis]
    return np.concatenate(out, axis=-1)


def make_flat_video_rope_buffers(d_model, n_heads, sample_size, n_frames):
    """cos/sin buffers matching FlatVideoRoPE.__init__ -> (S_total, Dh//2) f32."""
    d_head = d_model // n_heads
    p = sample_size

    # video: RotaryEmbedding(d_head // 4, freqs_for='pixel', max_freq=256)
    vid_dim = d_head // 4
    vid_base = np.linspace(1.0, 256.0 / 2.0, vid_dim // 2) * math.pi
    vid = _axial_freqs((n_frames, p, p, 1), (0, 0, 0, 1), vid_base, pixel=True)
    vid = vid.reshape(n_frames, p * p, -1)                # (F, p*p, d_head)

    # audio: RotaryEmbedding(d_head // 2)  (lang freqs, theta=10000)
    aud_dim = d_head // 2
    aud_base = 1.0 / (10000.0 ** (np.arange(0, aud_dim, 2)[: aud_dim // 2] / aud_dim))
    aud = _axial_freqs((n_frames, 1), (0, 1), aud_base, pixel=False)
    aud = aud.reshape(n_frames, 1, -1)                    # (F, 1, d_head)

    freqs = np.concatenate([vid, aud], axis=1).reshape(-1, d_head)  # (F*(p*p+1), Dh)
    cos = np.cos(freqs)[..., ::2].astype(np.float32)      # (S_total, Dh//2)
    sin = np.sin(freqs)[..., ::2].astype(np.float32)
    return jnp.asarray(cos), jnp.asarray(sin)


def prepare_rope_tables(cos, sin):
    """Lane-expanded / sign-folded tables, built ONCE (hoisted off the hot path).

    ctab = [cos | cos], stab = [-sin | sin], shape (S_total, Dh) float32, so the
    in-kernel rotation is a single fused multiply-add producing cat(y0, y1).
    """
    ctab = jnp.concatenate([cos, cos], axis=-1)
    stab = jnp.concatenate([-sin, sin], axis=-1)
    return ctab, stab


@lru_cache(maxsize=None)
def _perm_blockdiag_np(d_head, lanes):
    """LxL block-diagonal 0/1 perms: per Dh segment [even|odd] and [odd|even]."""
    half = d_head // 2
    j = np.arange(half)
    p1 = np.zeros((d_head, d_head), np.float32)
    p2 = np.zeros((d_head, d_head), np.float32)
    p1[2 * j, j] = 1.0
    p1[2 * j + 1, half + j] = 1.0
    p2[2 * j + 1, j] = 1.0
    p2[2 * j, half + j] = 1.0
    eye = np.eye(lanes // d_head, dtype=np.float32)
    return np.kron(eye, p1), np.kron(eye, p2)


# -----------------------------------------------------------------------------
# Kernel: one grid step = G heads x TR lane-dense rows.  No per-head Python
# loop: one batched matmul per permutation, one FMA, one full-width store.
# -----------------------------------------------------------------------------
def _rope_kernel(x_ref, c_ref, s_ref, p1_ref, p2_ref, o_ref):
    x = x_ref[...]                                   # (G, TR, L) interleaved, x dtype
    # Exact even/odd de-interleave on the MXU (0/1 perms, f32 accumulation).
    xa = jnp.einsum("grk,gkn->grn", x, p1_ref[...],
                    preferred_element_type=jnp.float32)   # [x_even | x_odd]
    xb = jnp.einsum("grk,gkn->grn", x, p2_ref[...],
                    preferred_element_type=jnp.float32)   # [x_odd  | x_even]
    c = c_ref[...][None]                             # (1, TR, L) f32  [cos | cos]
    s = s_ref[...][None]                             # (1, TR, L) f32  [-sin | sin]
    # Lane-dense fused rotation + single full-width store ( == cat(y0, y1) ).
    o_ref[...] = (xa * c + xb * s).astype(o_ref.dtype)


_BLOCK_BYTES = 1 << 20       # ~1 MiB activation block: ~85%+ of HBM roofline and
                             # comfortably inside v7x's 64 MiB VMEM once in/out
                             # double-buffering, f32 intermediates and tables count.
_MAX_PERM_BYTES = 1 << 20    # cap on the replicated permutation operand


def flat_video_rope(x, ctab, stab, offset=0, *, block_bytes=_BLOCK_BYTES):
    """x: [B, H, S, Dh] -> [B, H, S, Dh], matching FlatVideoRoPE.forward."""
    B, H, S, Dh = x.shape
    assert Dh % 2 == 0, "head dim must be even for RoPE"
    assert ctab.shape[-1] == Dh and stab.shape[-1] == Dh
    assert 0 <= offset and offset + S <= ctab.shape[0], (
        "offset + seq_len exceeds precomputed RoPE table length")
    # TODO(synk): head dims that do not divide 128 (e.g. 96) would need a
    # mixed-width lane layout; not supported by this kernel.
    assert 128 % Dh == 0, "head dim must divide 128 for the lane-dense layout"

    # 256-wide rows fill the v6e/v7x 256x256 MXU when the flat row length allows;
    # 128 is always legal and matches the v5e MXU.
    lanes = 256 if (S * Dh) % 256 == 0 else 128
    tok_per_row = lanes // Dh

    c_s = jax.lax.slice_in_dim(ctab, offset, offset + S, axis=0)   # (S, Dh) f32
    s_s = jax.lax.slice_in_dim(stab, offset, offset + S, axis=0)

    # Rarely-needed padding so S*Dh is a multiple of `lanes`.
    S_pad = ((S + tok_per_row - 1) // tok_per_row) * tok_per_row
    if S_pad != S:
        pad = S_pad - S
        x = jnp.pad(x, ((0, 0), (0, 0), (0, pad), (0, 0)))
        c_s = jnp.pad(c_s, ((0, pad), (0, 0)))
        s_s = jnp.pad(s_s, ((0, pad), (0, 0)))

    bh = B * H
    R = (S_pad * Dh) // lanes
    # FREE contiguous reshapes (done in the wrapper, never in-kernel): every
    # L-wide row holds tok_per_row whole tokens -> loads/matmuls/stores are
    # fully lane-dense (no masked vst.msk, full MXU lanes).
    xr = x.reshape(bh, R, lanes)
    c2 = c_s.reshape(R, lanes)
    s2 = s_s.reshape(R, lanes)

    itemsize = x.dtype.itemsize

    # ---- S (row) tiling: only kicks in for very long sequences --------------
    row_bytes = lanes * max(itemsize, 4)          # f32 tables are the larger tile
    if R * row_bytes <= block_bytes:
        TR = R                                    # full-extent block (always legal)
    else:
        TR = max(16, (block_bytes // row_bytes) // 16 * 16)
        TR = min(TR, R)
    num_r = pl.cdiv(R, TR)

    # ---- head grouping: big blocks, no bh % G divisibility requirement ------
    per_head = TR * lanes * itemsize
    max_g = max(1, _MAX_PERM_BYTES // (lanes * lanes * itemsize))
    G = int(max(1, min(bh, block_bytes // per_head, max_g)))
    # v7x megacore: keep at least 2 grid steps so both TensorCores get work.
    if num_r * pl.cdiv(bh, G) < 2 and bh >= 2:
        G = pl.cdiv(bh, 2)
    num_g = pl.cdiv(bh, G)

    # Block-diagonal 0/1 permutations in the activation dtype (bf16 stays a
    # single-pass MXU product), replicated over the head group so the whole
    # de-interleave is one batched einsum.
    p1_np, p2_np = _perm_blockdiag_np(Dh, lanes)
    p1 = jnp.broadcast_to(jnp.asarray(p1_np, dtype=x.dtype)[None], (G, lanes, lanes))
    p2 = jnp.broadcast_to(jnp.asarray(p2_np, dtype=x.dtype)[None], (G, lanes, lanes))

    grid = (num_r, num_g)   # r outermost: tables stay resident across the g axis

    out = pl.pallas_call(
        _rope_kernel,
        out_shape=jax.ShapeDtypeStruct((bh, R, lanes), x.dtype),
        grid=grid,
        in_specs=[
            pl.BlockSpec((G, TR, lanes), lambda r, g: (g, r, 0)),     # x block
            pl.BlockSpec((TR, lanes), lambda r, g: (r, 0)),           # [cos|cos]
            pl.BlockSpec((TR, lanes), lambda r, g: (r, 0)),           # [-sin|sin]
            pl.BlockSpec((G, lanes, lanes), lambda r, g: (0, 0, 0),
                         pipeline_mode=pl.Buffered(1)),               # P1 (resident)
            pl.BlockSpec((G, lanes, lanes), lambda r, g: (0, 0, 0),
                         pipeline_mode=pl.Buffered(1)),               # P2 (resident)
        ],
        out_specs=pl.BlockSpec((G, TR, lanes), lambda r, g: (g, r, 0)),
        compiler_params=pltpu.CompilerParams(
            dimension_semantics=("parallel", "parallel"),
            vmem_limit_bytes=32 * 1024 * 1024,
        ),
    )(xr, c2, s2, p1, p2)

    out = out.reshape(B, H, S_pad, Dh)
    if S_pad != S:
        out = jax.lax.slice_in_dim(out, 0, S, axis=2)
    return out


# -----------------------------------------------------------------------------
# Pure-JAX reference (mirrors the PyTorch forward exactly).
# -----------------------------------------------------------------------------
def _rope_ref(x, cos, sin, offset=0):
    S = x.shape[2]
    c = cos[offset:offset + S]
    s = sin[offset:offset + S]
    xf = x.astype(jnp.float32)
    x0 = xf[..., 0::2]
    x1 = xf[..., 1::2]
    y0 = x0 * c - x1 * s
    y1 = x1 * c + x0 * s
    return jnp.concatenate([y0, y1], axis=-1).astype(x.dtype)


if __name__ == "__main__":
    # Small synthetic config (consistent with the module):
    d_model, n_heads, sample_size, n_frames = 128, 4, 4, 4
    d_head = d_model // n_heads                  # 32
    tokens_per_frame = sample_size ** 2 + 1      # 16 video + 1 audio = 17
    B, H, S, Dh = 2, n_heads, n_frames * tokens_per_frame, d_head  # (2, 4, 68, 32)

    cos, sin = make_flat_video_rope_buffers(d_model, n_heads, sample_size, n_frames)
    ctab, stab = prepare_rope_tables(cos, sin)   # hoisted out of the forward

    key = jax.random.PRNGKey(0)
    x = jax.random.normal(key, (B, H, S, Dh), dtype=jnp.bfloat16)

    rope = jax.jit(flat_video_rope, static_argnames=("offset", "block_bytes"))
    y = jax.block_until_ready(rope(x, ctab, stab))

    y_ref = _rope_ref(x, cos, sin, offset=0)
    np.testing.assert_allclose(
        np.asarray(y, dtype=np.float32),
        np.asarray(y_ref, dtype=np.float32),
        rtol=1e-2, atol=1e-2,
    )
    assert y.shape == x.shape and y.dtype == x.dtype
    print("KERNEL_OK")
</pallas_src>

<mosaic_0001>
module attributes {stable_mosaic.version = 11 : i64} {
  func.func @_rope_kernel(%arg0: i32, %arg1: i32, %arg2: memref<4x17x128xbf16, #tpu.memory_space<vmem>>, %arg3: memref<17x128xf32, #tpu.memory_space<vmem>>, %arg4: memref<17x128xf32, #tpu.memory_space<vmem>>, %arg5: memref<4x128x128xbf16, #tpu.memory_space<vmem>>, %arg6: memref<4x128x128xbf16, #tpu.memory_space<vmem>>, %arg7: memref<4x17x128xbf16, #tpu.memory_space<vmem>>) attributes {dimension_semantics = [#tpu.dimension_semantics<parallel>, #tpu.dimension_semantics<parallel>], iteration_bounds = array<i64: 1, 2>, scalar_prefetch = 0 : i64, scratch_operands = 0 : i64, tpu.core_type = #tpu.core_type<tc>, window_params = [{transform_indices = @transform_0, window_bounds = array<i64: 4, 17, 128>}, {transform_indices = @transform_1, window_bounds = array<i64: 17, 128>}, {transform_indices = @transform_2, window_bounds = array<i64: 17, 128>}, {pipeline_mode = #tpu.pipeline_mode<synchronous>, transform_indices = @transform_3, window_bounds = array<i64: 4, 128, 128>}, {pipeline_mode = #tpu.pipeline_mode<synchronous>, transform_indices = @transform_4, window_bounds = array<i64: 4, 128, 128>}, {transform_indices = @transform_5, window_bounds = array<i64: 4, 17, 128>}]} {
    %c0 = arith.constant 0 : index
    %c0_0 = arith.constant 0 : index
    %c0_1 = arith.constant 0 : index
    %0 = vector.load %arg2[%c0, %c0_0, %c0_1] : memref<4x17x128xbf16, #tpu.memory_space<vmem>>, vector<4x17x128xbf16>
    %c0_2 = arith.constant 0 : index
    %c0_3 = arith.constant 0 : index
    %c0_4 = arith.constant 0 : index
    %1 = vector.load %arg5[%c0_2, %c0_3, %c0_4] : memref<4x128x128xbf16, #tpu.memory_space<vmem>>, vector<4x128x128xbf16>
    "tpu.trace_start"() <{level = 10 : i32, message = "grk,gkn->grn"}> : () -> ()
    %cst = arith.constant dense<0.000000e+00> : vector<4x17x128xf32>
    %2 = tpu.matmul %0, %1, %cst {dimension_numbers = #tpu.dot_dimension_numbers<[2], [1], [1], [2], [0, 0, 0, 1, 1, 2], [0], [0]>} : vector<4x17x128xbf16>, vector<4x128x128xbf16>, vector<4x17x128xf32> -> vector<4x17x128xf32>
    "tpu.trace_stop"() : () -> ()
    %c0_5 = arith.constant 0 : index
    %c0_6 = arith.constant 0 : index
    %c0_7 = arith.constant 0 : index
    %3 = vector.load %arg6[%c0_5, %c0_6, %c0_7] : memref<4x128x128xbf16, #tpu.memory_space<vmem>>, vector<4x128x128xbf16>
    "tpu.trace_start"() <{level = 10 : i32, message = "grk,gkn->grn"}> : () -> ()
    %cst_8 = arith.constant dense<0.000000e+00> : vector<4x17x128xf32>
    %4 = tpu.matmul %0, %3, %cst_8 {dimension_numbers = #tpu.dot_dimension_numbers<[2], [1], [1], [2], [0, 0, 0, 1, 1, 2], [0], [0]>} : vector<4x17x128xbf16>, vector<4x128x128xbf16>, vector<4x17x128xf32> -> vector<4x17x128xf32>
    "tpu.trace_stop"() : () -> ()
    %c0_9 = arith.constant 0 : index
    %c0_10 = arith.constant 0 : index
    %5 = vector.load %arg3[%c0_9, %c0_10] : memref<17x128xf32, #tpu.memory_space<vmem>>, vector<17x128xf32>
    %6 = vector.shape_cast %5 : vector<17x128xf32> to vector<1x17x128xf32>
    %c0_11 = arith.constant 0 : index
    %c0_12 = arith.constant 0 : index
    %7 = vector.load %arg4[%c0_11, %c0_12] : memref<17x128xf32, #tpu.memory_space<vmem>>, vector<17x128xf32>
    %8 = vector.shape_cast %7 : vector<17x128xf32> to vector<1x17x128xf32>
    %9 = vector.broadcast %6 : vector<1x17x128xf32> to vector<4x17x128xf32>
    %10 = arith.mulf %2, %9 : vector<4x17x128xf32>
    %11 = vector.broadcast %8 : vector<1x17x128xf32> to vector<4x17x128xf32>
    %12 = arith.mulf %4, %11 : vector<4x17x128xf32>
    %13 = arith.addf %10, %12 : vector<4x17x128xf32>
    %14 = arith.truncf %13 : vector<4x17x128xf32> to vector<4x17x128xbf16>
    %c0_13 = arith.constant 0 : index
    %c0_14 = arith.constant 0 : index
    %c0_15 = arith.constant 0 : index
    %15 = vector.load %arg7[%c0_13, %c0_14, %c0_15] : memref<4x17x128xbf16, #tpu.memory_space<vmem>>, vector<4x17x128xbf16>
    tpu.vector_store %arg7[%c0_13, %c0_14, %c0_15], %14 {strides = array<i32>} : memref<4x17x128xbf16, #tpu.memory_space<vmem>>, vector<4x17x128xbf16>,
    return
  }
  func.func @transform_0(%arg0: i32, %arg1: i32) -> (i32, i32, i32) {
    %c0_i32 = arith.constant 0 : i32
    %c0_i32_0 = arith.constant 0 : i32
    return %arg1, %arg0, %c0_i32 : i32, i32, i32
  }
  func.func @transform_1(%arg0: i32, %arg1: i32) -> (i32, i32) {
    %c0_i32 = arith.constant 0 : i32
    %c0_i32_0 = arith.constant 0 : i32
    return %arg0, %c0_i32 : i32, i32
  }
  func.func @transform_2(%arg0: i32, %arg1: i32) -> (i32, i32) {
    %c0_i32 = arith.constant 0 : i32
    %c0_i32_0 = arith.constant 0 : i32
    return %arg0, %c0_i32 : i32, i32
  }
  func.func @transform_3(%arg0: i32, %arg1: i32) -> (i32, i32, i32) {
    %c0_i32 = arith.constant 0 : i32
    %c0_i32_0 = arith.constant 0 : i32
    %c0_i32_1 = arith.constant 0 : i32
    %c0_i32_2 = arith.constant 0 : i32
    return %c0_i32, %c0_i32_0, %c0_i32_1 : i32, i32, i32
  }
  func.func @transform_4(%arg0: i32, %arg1: i32) -> (i32, i32, i32) {
    %c0_i32 = arith.constant 0 : i32
    %c0_i32_0 = arith.constant 0 : i32
    %c0_i32_1 = arith.constant 0 : i32
    %c0_i32_2 = arith.constant 0 : i32
    return %c0_i32, %c0_i32_0, %c0_i32_1 : i32, i32, i32
  }
  func.func @transform_5(%arg0: i32, %arg1: i32) -> (i32, i32, i32) {
    %c0_i32 = arith.constant 0 : i32
    %c0_i32_0 = arith.constant 0 : i32
    return %arg1, %arg0, %c0_i32 : i32, i32, i32
  }
}

</mosaic_0001>

<llo_original>
// kernel: flat_video_rope.1
$region0: #{flat_video_rope.1}
  #allocation0 [shape = 'u32[]', space=smem, size = 0x4, offset = 0x4, fixed_abs, tag = 'smem constant byte address 0x4 - core index']
  #allocation1 [shape = 'u32[144,128]{1,0:T(1,128)}', space=vmem, size = 0x12000, scoped, tag = 'internal scratch']
  %s0 = inlined_call_operand.vmem [shape: bf16[8,17,128], index: 0, kind: input, shape index: {}]
  %s1 = inlined_call_operand.vmem [shape: f32[17,128], index: 1, kind: input, shape index: {}]
  %s2 = inlined_call_operand.vmem [shape: f32[17,128], index: 2, kind: input, shape index: {}]
  %s3 = inlined_call_operand.vmem [shape: bf16[4,128,128], index: 3, kind: input, shape index: {}]
  %s4 = inlined_call_operand.vmem [shape: bf16[4,128,128], index: 4, kind: input, shape index: {}]
  %s5 = inlined_call_operand.vmem [shape: bf16[8,17,128], index: 5, kind: output, shape index: {}]
  %s6 = sld [smem:[#allocation0]]
  $region53: #{flat_video_rope.1} parent=0
    _
  %s8 = ssub.s32 1, %s6
  %s9 = scalar_select 0, %s8, %s6
  loop: start=0, step=1, limit=4
  $region2: #{flat_video_rope.1} parent=0 // loop_pre_header
    _
  $region3: #{flat_video_rope.1} parent=0 // loop_header
    %s11 = sphi 0, %s15
    %p12 = scmp.ge.s32.totalorder %s11, 4
    %s18 = sphi 0, %s30
    %s19 = sphi 0, %s26
    %s20 = sphi 0, %s18
    %s21 = sphi 0, %s19
    %s22 = sphi 0, %s20
    %s23 = sphi 0, %s21
    %s35 = sphi 0, %s37
    %s38 = sphi 0, %s35
    %s39 = sphi 0, %s38
    %s55 = sphi 0, %s39
    %s61 = sphi 0, %s63
    %s64 = sphi 0, %s61
    %s65 = sphi 0, %s64
    %s81 = sphi 0, %s65
    %s87 = sphi 0, %s89
    %s90 = sphi 0, %s87
    %s91 = sphi 0, %s90
    %s107 = sphi 0, %s91
    %s111 = sphi 0, %s111
    %s113 = sphi 0, %s111
    %s114 = sphi 0, %s113
    %s128 = sphi 0, %s114
    %s132 = sphi 0, %s132
    %s134 = sphi 0, %s132
    %s135 = sphi 0, %s134
    %s149 = sphi 0, %s135
    %s157 = sphi 0, %s159
    %s160 = sphi 0, %s157
    %s161 = sphi 0, %s160
    %s177 = sphi 0, %s161
  $region4: #{flat_video_rope.1} parent=0 // loop_header_branch
    %14 = sbr.rel (%p12) target = $region8
  $region5: #{flat_video_rope.1} parent=0 // loop_body
    %s16 = ssub.s32 %s11, 1
    %s17 = ssub.s32 %s11, 2
    %s24 = sadd.s32 1, %s19
    %p25 = scmp.ge.s32.totalorder %s24, 2
    %s26 = scalar_select %p25, 0, %s24
    %s27 = sadd.s32 1, %s18
    %s28 = scalar_select %p25, %s27, %s18
    %p29 = scmp.ge.s32.totalorder %s28, 1
    %s30 = scalar_select %p29, 0, %s28
    %s31 = ssub.s32 %s19, %s26
    %s32 = ssub.s32 %s18, %s30
    %s33 = sor.u32 %s31, %s32
    %p34 = scmp.eq.s32.totalorder %s33, 0
    %s36 = sadd.s32 %s35, 1
    %s37 = scalar_select %p34, %s35, %s36
    %p40 = pneg %p34
    %p41 = scmp.eq.s32.totalorder %s11, 1
    %p42 = por %p40, %p41
    %p43 = scmp.ne.s32.totalorder %s35, %s38
    %p44 = scmp.eq.s32.totalorder %s11, 0
    %p45 = por %p43, %p44
    %p46 = scmp.ne.s32.totalorder %s35, %s38
    %p47 = scmp.eq.s32.totalorder %s16, 1
    %p48 = por %p46, %p47
    %p49 = scmp.ne.s32.totalorder %s38, %s39
    %p50 = scmp.eq.s32.totalorder %s16, 0
    %p51 = por %p49, %p50
    %p52 = scmp.ne.s32.totalorder %s38, %s39
    %p53 = scmp.eq.s32.totalorder %s17, 1
    %p54 = por %p52, %p53
    %p56 = scmp.ne.s32.totalorder %s39, %s55
    %p57 = scmp.eq.s32.totalorder %s17, 0
    %p58 = por %p56, %p57
    %s59 = ssub.s32 %s18, %s30
    %p60 = scmp.eq.s32.totalorder %s59, 0
    %s62 = sadd.s32 %s61, 1
    %s63 = scalar_select %p60, %s61, %s62
    %p66 = pneg %p60
    %p67 = scmp.eq.s32.totalorder %s11, 1
    %p68 = por %p66, %p67
    %p69 = scmp.ne.s32.totalorder %s61, %s64
    %p70 = scmp.eq.s32.totalorder %s11, 0
    %p71 = por %p69, %p70
    %p72 = scmp.ne.s32.totalorder %s61, %s64
    %p73 = scmp.eq.s32.totalorder %s16, 1
    %p74 = por %p72, %p73
    %p75 = scmp.ne.s32.totalorder %s64, %s65
    %p76 = scmp.eq.s32.totalorder %s16, 0
    %p77 = por %p75, %p76
    %p78 = scmp.ne.s32.totalorder %s64, %s65
    %p79 = scmp.eq.s32.totalorder %s17, 1
    %p80 = por %p78, %p79
    %p82 = scmp.ne.s32.totalorder %s65, %s81
    %p83 = scmp.eq.s32.totalorder %s17, 0
    %p84 = por %p82, %p83
    %s85 = ssub.s32 %s18, %s30
    %p86 = scmp.eq.s32.totalorder %s85, 0
    %s88 = sadd.s32 %s87, 1
    %s89 = scalar_select %p86, %s87, %s88
    %p92 = pneg %p86
    %p93 = scmp.eq.s32.totalorder %s11, 1
    %p94 = por %p92, %p93
    %p95 = scmp.ne.s32.totalorder %s87, %s90
    %p96 = scmp.eq.s32.totalorder %s11, 0
    %p97 = por %p95, %p96
    %p98 = scmp.ne.s32.totalorder %s87, %s90
    %p99 = scmp.eq.s32.totalorder %s16, 1
    %p100 = por %p98, %p99
    %p101 = scmp.ne.s32.totalorder %s90, %s91
    %p102 = scmp.eq.s32.totalorder %s16, 0
    %p103 = por %p101, %p102
    %p104 = scmp.ne.s32.totalorder %s90, %s91
    %p105 = scmp.eq.s32.totalorder %s17, 1
    %p106 = por %p104, %p105
    %p108 = scmp.ne.s32.totalorder %s91, %s107
    %p109 = scmp.eq.s32.totalorder %s17, 0
    %p110 = por %p108, %p109
    %s112 = sadd.s32 %s111, 1
    %p115 = scmp.eq.s32.totalorder %s11, 1
    %p116 = scmp.ne.s32.totalorder %s111, %s113
    %p117 = scmp.eq.s32.totalorder %s11, 0
    %p118 = por %p116, %p117
    %p119 = scmp.ne.s32.totalorder %s111, %s113
    %p120 = scmp.eq.s32.totalorder %s16, 1
    %p121 = por %p119, %p120
    %p122 = scmp.ne.s32.totalorder %s113, %s114
    %p123 = scmp.eq.s32.totalorder %s16, 0
    %p124 = por %p122, %p123
    %p125 = scmp.ne.s32.totalorder %s113, %s114
    %p126 = scmp.eq.s32.totalorder %s17, 1
    %p127 = por %p125, %p126
    %p129 = scmp.ne.s32.totalorder %s114, %s128
    %p130 = scmp.eq.s32.totalorder %s17, 0
    %p131 = por %p129, %p130
    %s133 = sadd.s32 %s132, 1
    %p136 = scmp.eq.s32.totalorder %s11, 1
    %p137 = scmp.ne.s32.totalorder %s132, %s134
    %p138 = scmp.eq.s32.totalorder %s11, 0
    %p139 = por %p137, %p138
    %p140 = scmp.ne.s32.totalorder %s132, %s134
    %p141 = scmp.eq.s32.totalorder %s16, 1
    %p142 = por %p140, %p141
    %p143 = scmp.ne.s32.totalorder %s134, %s135
    %p144 = scmp.eq.s32.totalorder %s16, 0
    %p145 = por %p143, %p144
    %p146 = scmp.ne.s32.totalorder %s134, %s135
    %p147 = scmp.eq.s32.totalorder %s17, 1
    %p148 = por %p146, %p147
    %p150 = scmp.ne.s32.totalorder %s135, %s149
    %p151 = scmp.eq.s32.totalorder %s17, 0
    %p152 = por %p150, %p151
    %s153 = ssub.s32 %s19, %s26
    %s154 = ssub.s32 %s18, %s30
    %s155 = sor.u32 %s153, %s154
    %p156 = scmp.eq.s32.totalorder %s155, 0
    %s158 = sadd.s32 %s157, 1
    %s159 = scalar_select %p156, %s157, %s158
    %p162 = pneg %p156
    %p163 = scmp.eq.s32.totalorder %s11, 1
    %p164 = por %p162, %p163
    %p165 = scmp.ne.s32.totalorder %s157, %s160
    %p166 = scmp.eq.s32.totalorder %s11, 0
    %p167 = por %p165, %p166
    %p168 = scmp.ne.s32.totalorder %s157, %s160
    %p169 = scmp.eq.s32.totalorder %s16, 1
    %p170 = por %p168, %p169
    %p171 = scmp.ne.s32.totalorder %s160, %s161
    %p172 = scmp.eq.s32.totalorder %s16, 0
    %p173 = por %p171, %p172
    %p174 = scmp.ne.s32.totalorder %s160, %s161
    %p175 = scmp.eq.s32.totalorder %s17, 1
    %p176 = por %p174, %p175
    %p178 = scmp.ne.s32.totalorder %s161, %s177
    %p179 = scmp.eq.s32.totalorder %s17, 0
    %p180 = por %p178, %p179
    %p181 = scmp.le.s32.totalorder 1, %s11
    %p182 = scmp.lt.s32.totalorder %s11, 3
    %p183 = pnand %p181, %p182
    %p184 = pneg %p183
    // Predicated region
    $region9: #{flat_video_rope.1} parent=5 // pred_check
      _
    $region10: #{flat_video_rope.1} parent=5 // pred_check_branch
      %186 = sbr.rel (%p183) target = $region12
    $region11: #{flat_video_rope.1} parent=5 // pred_region
      %s187 = ssub.s32 %s11, 1
      // Predicated region
      $region13: #{flat_video_rope.1} parent=11 // pred_check
        %p188 = pneg %p77
      $region14: #{flat_video_rope.1} parent=11 // pred_check_branch
        %190 = sbr.rel (%p188) target = $region16
      $region15: #{flat_video_rope.1} parent=11 // pred_region
        %s191 = smul.u32 3, %s20
        %p192 = scmp.lt.s32.totalorder %s191, 2
        %s193 = scalar_select %p192, %s191, 2
        %s194 = smul.addr %s193, 8
        %s195 = scalar_lea.vmem %s1, %s194
        %s196 = smul.u32 3, %s20
      $region16: #{flat_video_rope.1} parent=11 // pred_fallthru
        _
      // Predicated region
      $region17: #{flat_video_rope.1} parent=11 // pred_check
        %p197 = pneg %p103
      $region18: #{flat_video_rope.1} parent=11 // pred_check_branch
        %199 = sbr.rel (%p197) target = $region20
      $region19: #{flat_video_rope.1} parent=11 // pred_region
        %s200 = smul.u32 3, %s20
        %p201 = scmp.lt.s32.totalorder %s200, 2
        %s202 = scalar_select %p201, %s200, 2
        %s203 = smul.addr %s202, 8
        %s204 = scalar_lea.vmem %s2, %s203
        %s205 = smul.u32 3, %s20
      $region20: #{flat_video_rope.1} parent=11 // pred_fallthru
        _
      // Predicated region
      $region21: #{flat_video_rope.1} parent=11 // pred_check
        %p206 = pneg %p124
      $region22: #{flat_video_rope.1} parent=11 // pred_check_branch
        %208 = sbr.rel (%p206) target = $region24
      $region23: #{flat_video_rope.1} parent=11 // pred_region
        _
      $region24: #{flat_video_rope.1} parent=11 // pred_fallthru
        _
      // Predicated region
      $region25: #{flat_video_rope.1} parent=11 // pred_check
        %p209 = pneg %p145
      $region26: #{flat_video_rope.1} parent=11 // pred_check_branch
        %211 = sbr.rel (%p209) target = $region28
      $region27: #{flat_video_rope.1} parent=11 // pred_region
        _
      $region28: #{flat_video_rope.1} parent=11 // pred_fallthru
        _
    $region12: #{flat_video_rope.1} parent=5 // pred_fallthru
      _
    %p212 = scmp.lt.s32.totalorder %s11, 2
    // Predicated region
    $region29: #{flat_video_rope.1} parent=5 // pred_check
      %p213 = pneg %p212
    $region30: #{flat_video_rope.1} parent=5 // pred_check_branch
      %215 = sbr.rel (%p213) target = $region32
    $region31: #{flat_video_rope.1} parent=5 // pred_region
      // Predicated region
      $region33: #{flat_video_rope.1} parent=31 // pred_check
        %p216 = pneg %p45
      $region34: #{flat_video_rope.1} parent=31 // pred_check_branch
        %218 = sbr.rel (%p216) target = $region36
      $region35: #{flat_video_rope.1} parent=31 // pred_region
        %s219 = smul.u32 4, %s19
        %s220 = smul.u32 3, %s18
        %p221 = scmp.lt.s32.totalorder %s219, 7
        %s222 = scalar_select %p221, %s219, 7
        %p223 = scmp.lt.s32.totalorder %s220, 2
        %s224 = scalar_select %p223, %s220, 2
        %s225 = smul.addr %s222, 3
        %s226 = sadd.s32 %s224, %s225
        %s227 = smul.addr %s226, 4
        %s228 = scalar_lea.vmem %s0, %s227
        %s229 = smul.u32 4, %s19
        %s230 = smul.u32 3, %s18
      $region36: #{flat_video_rope.1} parent=31 // pred_fallthru
        _
    $region32: #{flat_video_rope.1} parent=5 // pred_fallthru
      _
    %p231 = scmp.le.s32.totalorder 1, %s11
    %p232 = scmp.lt.s32.totalorder %s11, 3
    %p233 = pnand %p231, %p232
    %p234 = pneg %p233
    // Predicated region
    $region37: #{flat_video_rope.1} parent=5 // pred_check
      _
    $region38: #{flat_video_rope.1} parent=5 // pred_check_branch
      %236 = sbr.rel (%p233) target = $region40
    $region39: #{flat_video_rope.1} parent=5 // pred_region
      %s237 = ssub.s32 %s11, 1
      %s238 = smul.u32 4, %s21
      %s239 = smul.u32 3, %s20
      %p240 = scmp.lt.s32.totalorder %s238, 7
      %s241 = scalar_select %p240, %s238, 7
      %p242 = scmp.lt.s32.totalorder %s239, 2
      %s243 = scalar_select %p242, %s239, 2
      %s244 = smul.addr %s241, 3
      %s245 = sadd.s32 %s243, %s244
      %s246 = smul.addr %s245, 4
      %s247 = scalar_lea.vmem %s0, %s246
      %p248 = pneg %p51
      %p249 = pneg %p48
      %s250 = smul.u32 3, %s20
      %p251 = scmp.lt.s32.totalorder %s250, 2
      %s252 = scalar_select %p251, %s250, 2
      %s253 = smul.addr %s252, 8
      %s254 = scalar_lea.vmem %s1, %s253
      %p255 = pneg %p77
      %p256 = pneg %p74
      %s257 = smul.u32 3, %s20
      %p258 = scmp.lt.s32.totalorder %s257, 2
      %s259 = scalar_select %p258, %s257, 2
      %s260 = smul.addr %s259, 8
      %s261 = scalar_lea.vmem %s2, %s260
      %p262 = pneg %p103
      %p263 = pneg %p100
      %p264 = pneg %p124
      %p265 = pneg %p121
      %p266 = pneg %p145
      %p267 = pneg %p142
      %p268 = pneg %p173
      %p269 = pneg %p170
      %s270 = smul.u32 4, %s21
      %s271 = smul.u32 3, %s20
      %p272 = scmp.lt.s32.totalorder %s270, 7
      %s273 = scalar_select %p272, %s270, 7
      %p274 = scmp.lt.s32.totalorder %s271, 2
      %s275 = scalar_select %p274, %s271, 2
      %s276 = smul.addr %s273, 3
      %s277 = sadd.s32 %s275, %s276
      %s278 = smul.addr %s277, 4
      %s279 = scalar_lea.vmem %s5, %s278
      %s280 = smul.u32 4, %s21
      %s281 = smul.u32 3, %s20
      %p282 = scmp.lt.s32.totalorder %s280, 7
      %s283 = scalar_select %p282, %s280, 7
      %p284 = scmp.lt.s32.totalorder %s281, 2
      %s285 = scalar_select %p284, %s281, 2
      %s286 = smul.addr %s283, 3
      %s287 = sadd.s32 %s285, %s286
      %s288 = smul.addr %s287, 4
      %s289 = scalar_lea.vmem %s0, %s288
      %s290 = smul.u32 4, %s21
      %s291 = smul.u32 3, %s20
      %s292 = smul.u32 3, %s20
      %p293 = scmp.lt.s32.totalorder %s292, 2
      %s294 = scalar_select %p293, %s292, 2
      %s295 = smul.addr %s294, 8
      %s296 = scalar_lea.vmem %s1, %s295
      %s297 = smul.u32 3, %s20
      %s298 = smul.u32 3, %s20
      %p299 = scmp.lt.s32.totalorder %s298, 2
      %s300 = scalar_select %p299, %s298, 2
      %s301 = smul.addr %s300, 8
      %s302 = scalar_lea.vmem %s2, %s301
      %s303 = smul.u32 3, %s20
      %s304 = smul.u32 4, %s21
      %s305 = smul.u32 3, %s20
      %p306 = scmp.lt.s32.totalorder %s304, 7
      %s307 = scalar_select %p306, %s304, 7
      %p308 = scmp.lt.s32.totalorder %s305, 2
      %s309 = scalar_select %p308, %s305, 2
      %s310 = smul.addr %s307, 3
      %s311 = sadd.s32 %s309, %s310
      %s312 = smul.addr %s311, 4
      %s313 = scalar_lea.vmem %s5, %s312
      %s314 = smul.u32 4, %s21
      %s315 = smul.u32 3, %s20
      %v317 = vld [vmem:[%s289] sm:$0xf]
      %v318 = vld [vmem:[%s289 + $0x4] sm:$0xf]
      %v319 = vld [vmem:[%s289 + $0x8] sm:$0x1]
      %v320 = vld [vmem:[%s289 + $0xc] sm:$0xf]
      %v321 = vld [vmem:[%s289 + $0x10] sm:$0xf]
      %v322 = vld [vmem:[%s289 + $0x14] sm:$0x1]
      %v323 = vld [vmem:[%s289 + $0x18] sm:$0xf]
      %v324 = vld [vmem:[%s289 + $0x1c] sm:$0xf]
      %v325 = vld [vmem:[%s289 + $0x20] sm:$0x1]
      %v326 = vld [vmem:[%s289 + $0x24] sm:$0xf]
      %v327 = vld [vmem:[%s289 + $0x28] sm:$0xf]
      %v328 = vld [vmem:[%s289 + $0x2c] sm:$0x1]
      %v329 = vld [vmem:[%s3] sm:$0xf]
      %v330 = vld [vmem:[%s3 + $0x4] sm:$0xf]
      %v331 = vld [vmem:[%s3 + $0x8] sm:$0xf]
      %v332 = vld [vmem:[%s3 + $0xc] sm:$0xf]
      %v333 = vld [vmem:[%s3 + $0x10] sm:$0xf]
      %v334 = vld [vmem:[%s3 + $0x14] sm:$0xf]
      %v335 = vld [vmem:[%s3 + $0x18] sm:$0xf]
      %v336 = vld [vmem:[%s3 + $0x1c] sm:$0xf]
      %v337 = vld [vmem:[%s3 + $0x20] sm:$0xf]
      %v338 = vld [vmem:[%s3 + $0x24] sm:$0xf]
      %v339 = vld [vmem:[%s3 + $0x28] sm:$0xf]
      %v340 = vld [vmem:[%s3 + $0x2c] sm:$0xf]
      %v341 = vld [vmem:[%s3 + $0x30] sm:$0xf]
      %v342 = vld [vmem:[%s3 + $0x34] sm:$0xf]
      %v343 = vld [vmem:[%s3 + $0x38] sm:$0xf]
      %v344 = vld [vmem:[%s3 + $0x3c] sm:$0xf]
      %v345 = vld [vmem:[%s3 + $0x40] sm:$0xf]
      %v346 = vld [vmem:[%s3 + $0x44] sm:$0xf]
      %v347 = vld [vmem:[%s3 + $0x48] sm:$0xf]
      %v348 = vld [vmem:[%s3 + $0x4c] sm:$0xf]
      %v349 = vld [vmem:[%s3 + $0x50] sm:$0xf]
      %v350 = vld [vmem:[%s3 + $0x54] sm:$0xf]
      %v351 = vld [vmem:[%s3 + $0x58] sm:$0xf]
      %v352 = vld [vmem:[%s3 + $0x5c] sm:$0xf]
      %v353 = vld [vmem:[%s3 + $0x60] sm:$0xf]
      %v354 = vld [vmem:[%s3 + $0x64] sm:$0xf]
      %v355 = vld [vmem:[%s3 + $0x68] sm:$0xf]
      %v356 = vld [vmem:[%s3 + $0x6c] sm:$0xf]
      %v357 = vld [vmem:[%s3 + $0x70] sm:$0xf]
      %v358 = vld [vmem:[%s3 + $0x74] sm:$0xf]
      %v359 = vld [vmem:[%s3 + $0x78] sm:$0xf]
      %v360 = vld [vmem:[%s3 + $0x7c] sm:$0xf]
      %v361 = vld [vmem:[%s3 + $0x80] sm:$0xf]
      %v362 = vld [vmem:[%s3 + $0x84] sm:$0xf]
      %v363 = vld [vmem:[%s3 + $0x88] sm:$0xf]
      %v364 = vld [vmem:[%s3 + $0x8c] sm:$0xf]
      %v365 = vld [vmem:[%s3 + $0x90] sm:$0xf]
      %v366 = vld [vmem:[%s3 + $0x94] sm:$0xf]
      %v367 = vld [vmem:[%s3 + $0x98] sm:$0xf]
      %v368 = vld [vmem:[%s3 + $0x9c] sm:$0xf]
      %v369 = vld [vmem:[%s3 + $0xa0] sm:$0xf]
      %v370 = vld [vmem:[%s3 + $0xa4] sm:$0xf]
      %v371 = vld [vmem:[%s3 + $0xa8] sm:$0xf]
      %v372 = vld [vmem:[%s3 + $0xac] sm:$0xf]
      %v373 = vld [vmem:[%s3 + $0xb0] sm:$0xf]
      %v374 = vld [vmem:[%s3 + $0xb4] sm:$0xf]
      %v375 = vld [vmem:[%s3 + $0xb8] sm:$0xf]
      %v376 = vld [vmem:[%s3 + $0xbc] sm:$0xf]
      %v377 = vld [vmem:[%s3 + $0xc0] sm:$0xf]
      %v378 = vld [vmem:[%s3 + $0xc4] sm:$0xf]
      %v379 = vld [vmem:[%s3 + $0xc8] sm:$0xf]
      %v380 = vld [vmem:[%s3 + $0xcc] sm:$0xf]
      %v381 = vld [vmem:[%s3 + $0xd0] sm:$0xf]
      %v382 = vld [vmem:[%s3 + $0xd4] sm:$0xf]
      %v383 = vld [vmem:[%s3 + $0xd8] sm:$0xf]
      %v384 = vld [vmem:[%s3 + $0xdc] sm:$0xf]
      %v385 = vld [vmem:[%s3 + $0xe0] sm:$0xf]
      %v386 = vld [vmem:[%s3 + $0xe4] sm:$0xf]
      %v387 = vld [vmem:[%s3 + $0xe8] sm:$0xf]
      %v388 = vld [vmem:[%s3 + $0xec] sm:$0xf]
      %v389 = vld [vmem:[%s3 + $0xf0] sm:$0xf]
      %v390 = vld [vmem:[%s3 + $0xf4] sm:$0xf]
      %v391 = vld [vmem:[%s3 + $0xf8] sm:$0xf]
      %v392 = vld [vmem:[%s3 + $0xfc] sm:$0xf]
      %v396 = vunpack.c.l.b16 %v317
      %v397 = vunpack.c.l.b16 %v318
      %v398 = vunpack.c.l.b16 %v319
      %v399 = vpack.c.b16 %v397, %v396
      %v400 = vpack.c.b16 %v398, %v398
      %v419 = vunpack.c.l.b16 %v329
      %v420 = vunpack.c.l.b16 %v330
      %v421 = vunpack.c.l.b16 %v331
      %v422 = vunpack.c.l.b16 %v332
      %v423 = vunpack.c.l.b16 %v333
      %v424 = vunpack.c.l.b16 %v334
      %v425 = vunpack.c.l.b16 %v335
      %v426 = vunpack.c.l.b16 %v336
      %v427 = vunpack.c.l.b16 %v337
      %v428 = vunpack.c.l.b16 %v338
      %v429 = vunpack.c.l.b16 %v339
      %v430 = vunpack.c.l.b16 %v340
      %v431 = vunpack.c.l.b16 %v341
      %v432 = vunpack.c.l.b16 %v342
      %v433 = vunpack.c.l.b16 %v343
      %v434 = vunpack.c.l.b16 %v344
      %v435 = vpack.c.b16 %v420, %v419
      %v436 = vpack.c.b16 %v422, %v421
      %v437 = vpack.c.b16 %v424, %v423
      %v438 = vpack.c.b16 %v426, %v425
      %v439 = vpack.c.b16 %v428, %v427
      %v440 = vpack.c.b16 %v430, %v429
      %v441 = vpack.c.b16 %v432, %v431
      %v442 = vpack.c.b16 %v434, %v433
      %451 = vmatprep.subr.bf16.mxu0 0
      %452 = vmatpush1.bf16.msra.mxu0 %v435
      %453 = vmatprep.subr.bf16.mxu0 0
      %454 = vmatpush1.bf16.msra.mxu0 %v436
      %455 = vmatprep.subr.bf16.mxu0 0
      %456 = vmatpush1.bf16.msra.mxu0 %v437
      %457 = vmatprep.subr.bf16.mxu0 0
      %458 = vmatpush1.bf16.msra.mxu0 %v438
      %459 = vmatprep.subr.bf16.mxu0 0
      %460 = vmatpush1.bf16.msra.mxu0 %v439
      %461 = vmatprep.subr.bf16.mxu0 0
      %462 = vmatpush1.bf16.msra.mxu0 %v440
      %463 = vmatprep.subr.bf16.mxu0 0
      %464 = vmatpush1.bf16.msra.mxu0 %v441
      %465 = vmatprep.subr.bf16.mxu0 0
      %466 = vmatpush1.bf16.msra.mxu0 %v442
      %467 = vmatprep.subr.bf16.mxu0 0
      %468 = vmatpush1.bf16.msra.mxu0 0
      %469 = vmatprep.subr.bf16.mxu0 0
      %470 = vmatpush1.bf16.msra.mxu0 0
      %471 = vmatprep.subr.bf16.mxu0 0
      %472 = vmatpush1.bf16.msra.mxu0 0
      %473 = vmatprep.subr.bf16.mxu0 0
      %474 = vmatpush1.bf16.msra.mxu0 0
      %475 = vmatprep.subr.bf16.mxu0 0
      %476 = vmatpush1.bf16.msra.mxu0 0
      %477 = vmatprep.subr.bf16.mxu0 0
      %478 = vmatpush1.bf16.msra.mxu0 0
      %479 = vmatprep.subr.bf16.mxu0 0
      %480 = vmatpush1.bf16.msra.mxu0 0
      %481 = vmatprep.subr.bf16.mxu0 0
      %482 = vmatpush1.bf16.msra.mxu0 0
      %483 = vmatprep.mubr.bf16.mxu0 0
      %484 = vmatmul.mubr.bf16.gmra.mrb[0].mxu0 %v399
      %v485 = vpop.f32.mrb[0].mxu0
      %v486 = vadd.f32 0.0, %v485
      %v487 = vpop.f32.mrb[0].mxu0
      %v488 = vpop.f32.mrb[0].mxu0
      %v489 = vadd.f32 0.0, %v488
      %v490 = vpop.f32.mrb[0].mxu0
      %491 = vmatprep.mubr.bf16.mxu0 0
      %492 = vmatmul.mubr.bf16.gmra.mrb[0].mxu0 %v400
      %v493 = vpop.f32.mrb[0].mxu0
      %v494 = vadd.f32 0.0, %v493
      %v495 = vpop.f32.mrb[0].mxu0
      %v496 = vpop.f32.mrb[0].mxu0
      %v497 = vpop.f32.mrb[0].mxu0
      %498 = vdwg.mxu0
      %v502 = vunpack.c.l.b16 %v320
      %v503 = vunpack.c.l.b16 %v321
      %v504 = vunpack.c.l.b16 %v322
      %v505 = vpack.c.b16 %v503, %v502
      %v506 = vpack.c.b16 %v504, %v504
      %v525 = vunpack.c.l.b16 %v345
      %v526 = vunpack.c.l.b16 %v346
      %v527 = vunpack.c.l.b16 %v347
      %v528 = vunpack.c.l.b16 %v348
      %v529 = vunpack.c.l.b16 %v349
      %v530 = vunpack.c.l.b16 %v350
      %v531 = vunpack.c.l.b16 %v351
      %v532 = vunpack.c.l.b16 %v352
      %v533 = vunpack.c.l.b16 %v353
      %v534 = vunpack.c.l.b16 %v354
      %v535 = vunpack.c.l.b16 %v355
      %v536 = vunpack.c.l.b16 %v356
      %v537 = vunpack.c.l.b16 %v357
      %v538 = vunpack.c.l.b16 %v358
      %v539 = vunpack.c.l.b16 %v359
      %v540 = vunpack.c.l.b16 %v360
      %v541 = vpack.c.b16 %v526, %v525
      %v542 = vpack.c.b16 %v528, %v527
      %v543 = vpack.c.b16 %v530, %v529
      %v544 = vpack.c.b16 %v532, %v531
      %v545 = vpack.c.b16 %v534, %v533
      %v546 = vpack.c.b16 %v536, %v535
      %v547 = vpack.c.b16 %v538, %v537
      %v548 = vpack.c.b16 %v540, %v539
      %557 = vmatprep.subr.bf16.mxu0 0
      %558 = vmatpush1.bf16.msra.mxu0 %v541
      %559 = vmatprep.subr.bf16.mxu0 0
      %560 = vmatpush1.bf16.msra.mxu0 %v542
      %561 = vmatprep.subr.bf16.mxu0 0
      %562 = vmatpush1.bf16.msra.mxu0 %v543
      %563 = vmatprep.subr.bf16.mxu0 0
      %564 = vmatpush1.bf16.msra.mxu0 %v544
      %565 = vmatprep.subr.bf16.mxu0 0
      %566 = vmatpush1.bf16.msra.mxu0 %v545
      %567 = vmatprep.subr.bf16.mxu0 0
      %568 = vmatpush1.bf16.msra.mxu0 %v546
      %569 = vmatprep.subr.bf16.mxu0 0
      %570 = vmatpush1.bf16.msra.mxu0 %v547
      %571 = vmatprep.subr.bf16.mxu0 0
      %572 = vmatpush1.bf16.msra.mxu0 %v548
      %573 = vmatprep.subr.bf16.mxu0 0
      %574 = vmatpush1.bf16.msra.mxu0 0
      %575 = vmatprep.subr.bf16.mxu0 0
      %576 = vmatpush1.bf16.msra.mxu0 0
      %577 = vmatprep.subr.bf16.mxu0 0
      %578 = vmatpush1.bf16.msra.mxu0 0
      %579 = vmatprep.subr.bf16.mxu0 0
      %580 = vmatpush1.bf16.msra.mxu0 0
      %581 = vmatprep.subr.bf16.mxu0 0
      %582 = vmatpush1.bf16.msra.mxu0 0
      %583 = vmatprep.subr.bf16.mxu0 0
      %584 = vmatpush1.bf16.msra.mxu0 0
      %585 = vmatprep.subr.bf16.mxu0 0
      %586 = vmatpush1.bf16.msra.mxu0 0
      %587 = vmatprep.subr.bf16.mxu0 0
      %588 = vmatpush1.bf16.msra.mxu0 0
      %589 = vmatprep.mubr.bf16.mxu0 0
      %590 = vmatmul.mubr.bf16.gmra.mrb[0].mxu0 %v505
      %v591 = vpop.f32.mrb[0].mxu0
      %v592 = vadd.f32 0.0, %v591
      %v593 = vpop.f32.mrb[0].mxu0
      %v594 = vpop.f32.mrb[0].mxu0
      %v595 = vadd.f32 0.0, %v594
      %v596 = vpop.f32.mrb[0].mxu0
      %597 = vmatprep.mubr.bf16.mxu0 0
      %598 = vmatmul.mubr.bf16.gmra.mrb[0].mxu0 %v506
      %v599 = vpop.f32.mrb[0].mxu0
      %v600 = vadd.f32 0.0, %v599
      %v601 = vpop.f32.mrb[0].mxu0
      %v602 = vpop.f32.mrb[0].mxu0
      %v603 = vpop.f32.mrb[0].mxu0
      %604 = vdwg.mxu0
      %v608 = vunpack.c.l.b16 %v323
      %v609 = vunpack.c.l.b16 %v324
      %v610 = vunpack.c.l.b16 %v325
      %v611 = vpack.c.b16 %v609, %v608
      %v612 = vpack.c.b16 %v610, %v610
      %v631 = vunpack.c.l.b16 %v361
      %v632 = vunpack.c.l.b16 %v362
      %v633 = vunpack.c.l.b16 %v363
      %v634 = vunpack.c.l.b16 %v364
      %v635 = vunpack.c.l.b16 %v365
      %v636 = vunpack.c.l.b16 %v366
      %v637 = vunpack.c.l.b16 %v367
      %v638 = vunpack.c.l.b16 %v368
      %v639 = vunpack.c.l.b16 %v369
      %v640 = vunpack.c.l.b16 %v370
      %v641 = vunpack.c.l.b16 %v371
      %v642 = vunpack.c.l.b16 %v372
      %v643 = vunpack.c.l.b16 %v373
      %v644 = vunpack.c.l.b16 %v374
      %v645 = vunpack.c.l.b16 %v375
      %v646 = vunpack.c.l.b16 %v376
      %v647 = vpack.c.b16 %v632, %v631
      %v648 = vpack.c.b16 %v634, %v633
      %v649 = vpack.c.b16 %v636, %v635
      %v650 = vpack.c.b16 %v638, %v637
      %v651 = vpack.c.b16 %v640, %v639
      %v652 = vpack.c.b16 %v642, %v641
      %v653 = vpack.c.b16 %v644, %v643
      %v654 = vpack.c.b16 %v646, %v645
      %663 = vmatprep.subr.bf16.mxu0 0
      %664 = vmatpush1.bf16.msra.mxu0 %v647
      %665 = vmatprep.subr.bf16.mxu0 0
      %666 = vmatpush1.bf16.msra.mxu0 %v648
      %667 = vmatprep.subr.bf16.mxu0 0
      %668 = vmatpush1.bf16.msra.mxu0 %v649
      %669 = vmatprep.subr.bf16.mxu0 0
      %670 = vmatpush1.bf16.msra.mxu0 %v650
      %671 = vmatprep.subr.bf16.mxu0 0
      %672 = vmatpush1.bf16.msra.mxu0 %v651
      %673 = vmatprep.subr.bf16.mxu0 0
      %674 = vmatpush1.bf16.msra.mxu0 %v652
      %675 = vmatprep.subr.bf16.mxu0 0
      %676 = vmatpush1.bf16.msra.mxu0 %v653
      %677 = vmatprep.subr.bf16.mxu0 0
      %678 = vmatpush1.bf16.msra.mxu0 %v654
      %679 = vmatprep.subr.bf16.mxu0 0
      %680 = vmatpush1.bf16.msra.mxu0 0
      %681 = vmatprep.subr.bf16.mxu0 0
      %682 = vmatpush1.bf16.msra.mxu0 0
      %683 = vmatprep.subr.bf16.mxu0 0
      %684 = vmatpush1.bf16.msra.mxu0 0
      %685 = vmatprep.subr.bf16.mxu0 0
      %686 = vmatpush1.bf16.msra.mxu0 0
      %687 = vmatprep.subr.bf16.mxu0 0
      %688 = vmatpush1.bf16.msra.mxu0 0
      %689 = vmatprep.subr.bf16.mxu0 0
      %690 = vmatpush1.bf16.msra.mxu0 0
      %691 = vmatprep.subr.bf16.mxu0 0
      %692 = vmatpush1.bf16.msra.mxu0 0
      %693 = vmatprep.subr.bf16.mxu0 0
      %694 = vmatpush1.bf16.msra.mxu0 0
      %695 = vmatprep.mubr.bf16.mxu0 0
      %696 = vmatmul.mubr.bf16.gmra.mrb[0].mxu0 %v611
      %v697 = vpop.f32.mrb[0].mxu0
      %v698 = vadd.f32 0.0, %v697
      %v699 = vpop.f32.mrb[0].mxu0
      %v700 = vpop.f32.mrb[0].mxu0
      %v701 = vadd.f32 0.0, %v700
      %v702 = vpop.f32.mrb[0].mxu0
      %703 = vmatprep.mubr.bf16.mxu0 0
      %704 = vmatmul.mubr.bf16.gmra.mrb[0].mxu0 %v612
      %v705 = vpop.f32.mrb[0].mxu0
      %v706 = vadd.f32 0.0, %v705
      %v707 = vpop.f32.mrb[0].mxu0
      %v708 = vpop.f32.mrb[0].mxu0
      %v709 = vpop.f32.mrb[0].mxu0
      %710 = vdwg.mxu0
      %v714 = vunpack.c.l.b16 %v326
      %v715 = vunpack.c.l.b16 %v327
      %v716 = vunpack.c.l.b16 %v328
      %v717 = vpack.c.b16 %v715, %v714
      %v718 = vpack.c.b16 %v716, %v716
      %v737 = vunpack.c.l.b16 %v377
      %v738 = vunpack.c.l.b16 %v378
      %v739 = vunpack.c.l.b16 %v379
      %v740 = vunpack.c.l.b16 %v380
      %v741 = vunpack.c.l.b16 %v381
      %v742 = vunpack.c.l.b16 %v382
      %v743 = vunpack.c.l.b16 %v383
      %v744 = vunpack.c.l.b16 %v384
      %v745 = vunpack.c.l.b16 %v385
      %v746 = vunpack.c.l.b16 %v386
      %v747 = vunpack.c.l.b16 %v387
      %v748 = vunpack.c.l.b16 %v388
      %v749 = vunpack.c.l.b16 %v389
      %v750 = vunpack.c.l.b16 %v390
      %v751 = vunpack.c.l.b16 %v391
      %v752 = vunpack.c.l.b16 %v392
      %v753 = vpack.c.b16 %v738, %v737
      %v754 = vpack.c.b16 %v740, %v739
      %v755 = vpack.c.b16 %v742, %v741
      %v756 = vpack.c.b16 %v744, %v743
      %v757 = vpack.c.b16 %v746, %v745
      %v758 = vpack.c.b16 %v748, %v747
      %v759 = vpack.c.b16 %v750, %v749
      %v760 = vpack.c.b16 %v752, %v751
      %769 = vmatprep.subr.bf16.mxu0 0
      %770 = vmatpush1.bf16.msra.mxu0 %v753
      %771 = vmatprep.subr.bf16.mxu0 0
      %772 = vmatpush1.bf16.msra.mxu0 %v754
      %773 = vmatprep.subr.bf16.mxu0 0
      %774 = vmatpush1.bf16.msra.mxu0 %v755
      %775 = vmatprep.subr.bf16.mxu0 0
      %776 = vmatpush1.bf16.msra.mxu0 %v756
      %777 = vmatprep.subr.bf16.mxu0 0
      %778 = vmatpush1.bf16.msra.mxu0 %v757
      %779 = vmatprep.subr.bf16.mxu0 0
      %780 = vmatpush1.bf16.msra.mxu0 %v758
      %781 = vmatprep.subr.bf16.mxu0 0
      %782 = vmatpush1.bf16.msra.mxu0 %v759
      %783 = vmatprep.subr.bf16.mxu0 0
      %784 = vmatpush1.bf16.msra.mxu0 %v760
      %785 = vmatprep.subr.bf16.mxu0 0
      %786 = vmatpush1.bf16.msra.mxu0 0
      %787 = vmatprep.subr.bf16.mxu0 0
      %788 = vmatpush1.bf16.msra.mxu0 0
      %789 = vmatprep.subr.bf16.mxu0 0
      %790 = vmatpush1.bf16.msra.mxu0 0
      %791 = vmatprep.subr.bf16.mxu0 0
      %792 = vmatpush1.bf16.msra.mxu0 0
      %793 = vmatprep.subr.bf16.mxu0 0
      %794 = vmatpush1.bf16.msra.mxu0 0
      %795 = vmatprep.subr.bf16.mxu0 0
      %796 = vmatpush1.bf16.msra.mxu0 0
      %797 = vmatprep.subr.bf16.mxu0 0
      %798 = vmatpush1.bf16.msra.mxu0 0
      %799 = vmatprep.subr.bf16.mxu0 0
      %800 = vmatpush1.bf16.msra.mxu0 0
      %801 = vmatprep.mubr.bf16.mxu0 0
      %802 = vmatmul.mubr.bf16.gmra.mrb[0].mxu0 %v717
      %v803 = vpop.f32.mrb[0].mxu0
      %v804 = vadd.f32 0.0, %v803
      %v805 = vpop.f32.mrb[0].mxu0
      %v806 = vpop.f32.mrb[0].mxu0
      %v807 = vadd.f32 0.0, %v806
      %v808 = vpop.f32.mrb[0].mxu0
      %809 = vmatprep.mubr.bf16.mxu0 0
      %810 = vmatmul.mubr.bf16.gmra.mrb[0].mxu0 %v718
      %v811 = vpop.f32.mrb[0].mxu0
      %v812 = vadd.f32 0.0, %v811
      %v813 = vpop.f32.mrb[0].mxu0
      %v814 = vpop.f32.mrb[0].mxu0
      %v815 = vpop.f32.mrb[0].mxu0
      %816 = vdwg.mxu0
      %v817 = vld [vmem:[%s4] sm:$0xf]
      %v818 = vld [vmem:[%s4 + $0x4] sm:$0xf]
      %v819 = vld [vmem:[%s4 + $0x8] sm:$0xf]
      %v820 = vld [vmem:[%s4 + $0xc] sm:$0xf]
      %v821 = vld [vmem:[%s4 + $0x10] sm:$0xf]
      %v822 = vld [vmem:[%s4 + $0x14] sm:$0xf]
      %v823 = vld [vmem:[%s4 + $0x18] sm:$0xf]
      %v824 = vld [vmem:[%s4 + $0x1c] sm:$0xf]
      %v825 = vld [vmem:[%s4 + $0x20] sm:$0xf]
      %v826 = vld [vmem:[%s4 + $0x24] sm:$0xf]
      %v827 = vld [vmem:[%s4 + $0x28] sm:$0xf]
      %v828 = vld [vmem:[%s4 + $0x2c] sm:$0xf]
      %v829 = vld [vmem:[%s4 + $0x30] sm:$0xf]
      %v830 = vld [vmem:[%s4 + $0x34] sm:$0xf]
      %v831 = vld [vmem:[%s4 + $0x38] sm:$0xf]
      %v832 = vld [vmem:[%s4 + $0x3c] sm:$0xf]
      %v833 = vld [vmem:[%s4 + $0x40] sm:$0xf]
      %v834 = vld [vmem:[%s4 + $0x44] sm:$0xf]
      %v835 = vld [vmem:[%s4 + $0x48] sm:$0xf]
      %v836 = vld [vmem:[%s4 + $0x4c] sm:$0xf]
      %v837 = vld [vmem:[%s4 + $0x50] sm:$0xf]
      %v838 = vld [vmem:[%s4 + $0x54] sm:$0xf]
      %v839 = vld [vmem:[%s4 + $0x58] sm:$0xf]
      %v840 = vld [vmem:[%s4 + $0x5c] sm:$0xf]
      %v841 = vld [vmem:[%s4 + $0x60] sm:$0xf]
      %v842 = vld [vmem:[%s4 + $0x64] sm:$0xf]
      %v843 = vld [vmem:[%s4 + $0x68] sm:$0xf]
      %v844 = vld [vmem:[%s4 + $0x6c] sm:$0xf]
      %v845 = vld [vmem:[%s4 + $0x70] sm:$0xf]
      %v846 = vld [vmem:[%s4 + $0x74] sm:$0xf]
      %v847 = vld [vmem:[%s4 + $0x78] sm:$0xf]
      %v848 = vld [vmem:[%s4 + $0x7c] sm:$0xf]
      %v849 = vld [vmem:[%s4 + $0x80] sm:$0xf]
      %v850 = vld [vmem:[%s4 + $0x84] sm:$0xf]
      %v851 = vld [vmem:[%s4 + $0x88] sm:$0xf]
      %v852 = vld [vmem:[%s4 + $0x8c] sm:$0xf]
      %v853 = vld [vmem:[%s4 + $0x90] sm:$0xf]
      %v854 = vld [vmem:[%s4 + $0x94] sm:$0xf]
      %v855 = vld [vmem:[%s4 + $0x98] sm:$0xf]
      %v856 = vld [vmem:[%s4 + $0x9c] sm:$0xf]
      %v857 = vld [vmem:[%s4 + $0xa0] sm:$0xf]
      %v858 = vld [vmem:[%s4 + $0xa4] sm:$0xf]
      %v859 = vld [vmem:[%s4 + $0xa8] sm:$0xf]
      %v860 = vld [vmem:[%s4 + $0xac] sm:$0xf]
      %v861 = vld [vmem:[%s4 + $0xb0] sm:$0xf]
      %v862 = vld [vmem:[%s4 + $0xb4] sm:$0xf]
      %v863 = vld [vmem:[%s4 + $0xb8] sm:$0xf]
      %v864 = vld [vmem:[%s4 + $0xbc] sm:$0xf]
      %v865 = vld [vmem:[%s4 + $0xc0] sm:$0xf]
      %v866 = vld [vmem:[%s4 + $0xc4] sm:$0xf]
      %v867 = vld [vmem:[%s4 + $0xc8] sm:$0xf]
      %v868 = vld [vmem:[%s4 + $0xcc] sm:$0xf]
      %v869 = vld [vmem:[%s4 + $0xd0] sm:$0xf]
      %v870 = vld [vmem:[%s4 + $0xd4] sm:$0xf]
      %v871 = vld [vmem:[%s4 + $0xd8] sm:$0xf]
      %v872 = vld [vmem:[%s4 + $0xdc] sm:$0xf]
      %v873 = vld [vmem:[%s4 + $0xe0] sm:$0xf]
      %v874 = vld [vmem:[%s4 + $0xe4] sm:$0xf]
      %v875 = vld [vmem:[%s4 + $0xe8] sm:$0xf]
      %v876 = vld [vmem:[%s4 + $0xec] sm:$0xf]
      %v877 = vld [vmem:[%s4 + $0xf0] sm:$0xf]
      %v878 = vld [vmem:[%s4 + $0xf4] sm:$0xf]
      %v879 = vld [vmem:[%s4 + $0xf8] sm:$0xf]
      %v880 = vld [vmem:[%s4 + $0xfc] sm:$0xf]
      %v897 = vunpack.c.l.b16 %v817
      %v898 = vunpack.c.l.b16 %v818
      %v899 = vunpack.c.l.b16 %v819
      %v900 = vunpack.c.l.b16 %v820
      %v901 = vunpack.c.l.b16 %v821
      %v902 = vunpack.c.l.b16 %v822
      %v903 = vunpack.c.l.b16 %v823
      %v904 = vunpack.c.l.b16 %v824
      %v905 = vunpack.c.l.b16 %v825
      %v906 = vunpack.c.l.b16 %v826
      %v907 = vunpack.c.l.b16 %v827
      %v908 = vunpack.c.l.b16 %v828
      %v909 = vunpack.c.l.b16 %v829
      %v910 = vunpack.c.l.b16 %v830
      %v911 = vunpack.c.l.b16 %v831
      %v912 = vunpack.c.l.b16 %v832
      %v913 = vpack.c.b16 %v898, %v897
      %v914 = vpack.c.b16 %v900, %v899
      %v915 = vpack.c.b16 %v902, %v901
      %v916 = vpack.c.b16 %v904, %v903
      %v917 = vpack.c.b16 %v906, %v905
      %v918 = vpack.c.b16 %v908, %v907
      %v919 = vpack.c.b16 %v910, %v909
      %v920 = vpack.c.b16 %v912, %v911
      %929 = vmatprep.subr.bf16.mxu0 0
      %930 = vmatpush1.bf16.msra.mxu0 %v913
      %931 = vmatprep.subr.bf16.mxu0 0
      %932 = vmatpush1.bf16.msra.mxu0 %v914
      %933 = vmatprep.subr.bf16.mxu0 0
      %934 = vmatpush1.bf16.msra.mxu0 %v915
      %935 = vmatprep.subr.bf16.mxu0 0
      %936 = vmatpush1.bf16.msra.mxu0 %v916
      %937 = vmatprep.subr.bf16.mxu0 0
      %938 = vmatpush1.bf16.msra.mxu0 %v917
      %939 = vmatprep.subr.bf16.mxu0 0
      %940 = vmatpush1.bf16.msra.mxu0 %v918
      %941 = vmatprep.subr.bf16.mxu0 0
      %942 = vmatpush1.bf16.msra.mxu0 %v919
      %943 = vmatprep.subr.bf16.mxu0 0
      %944 = vmatpush1.bf16.msra.mxu0 %v920
      %945 = vmatprep.subr.bf16.mxu0 0
      %946 = vmatpush1.bf16.msra.mxu0 0
      %947 = vmatprep.subr.bf16.mxu0 0
      %948 = vmatpush1.bf16.msra.mxu0 0
      %949 = vmatprep.subr.bf16.mxu0 0
      %950 = vmatpush1.bf16.msra.mxu0 0
      %951 = vmatprep.subr.bf16.mxu0 0
      %952 = vmatpush1.bf16.msra.mxu0 0
      %953 = vmatprep.subr.bf16.mxu0 0
      %954 = vmatpush1.bf16.msra.mxu0 0
      %955 = vmatprep.subr.bf16.mxu0 0
      %956 = vmatpush1.bf16.msra.mxu0 0
      %957 = vmatprep.subr.bf16.mxu0 0
      %958 = vmatpush1.bf16.msra.mxu0 0
      %959 = vmatprep.subr.bf16.mxu0 0
      %960 = vmatpush1.bf16.msra.mxu0 0
      %961 = vmatprep.mubr.bf16.mxu0 0
      %962 = vmatmul.mubr.bf16.gmra.mrb[0].mxu0 %v399
      %v963 = vpop.f32.mrb[0].mxu0
      %v964 = vadd.f32 0.0, %v963
      %v965 = vpop.f32.mrb[0].mxu0
      %v966 = vpop.f32.mrb[0].mxu0
      %v967 = vadd.f32 0.0, %v966
      %v968 = vpop.f32.mrb[0].mxu0
      %969 = vmatprep.mubr.bf16.mxu0 0
      %970 = vmatmul.mubr.bf16.gmra.mrb[0].mxu0 %v400
      %v971 = vpop.f32.mrb[0].mxu0
      %v972 = vadd.f32 0.0, %v971
      %v973 = vpop.f32.mrb[0].mxu0
      %v974 = vpop.f32.mrb[0].mxu0
      %v975 = vpop.f32.mrb[0].mxu0
      %976 = vdwg.mxu0
      %v993 = vunpack.c.l.b16 %v833
      %v994 = vunpack.c.l.b16 %v834
      %v995 = vunpack.c.l.b16 %v835
      %v996 = vunpack.c.l.b16 %v836
      %v997 = vunpack.c.l.b16 %v837
      %v998 = vunpack.c.l.b16 %v838
      %v999 = vunpack.c.l.b16 %v839
      %v1000 = vunpack.c.l.b16 %v840
      %v1001 = vunpack.c.l.b16 %v841
      %v1002 = vunpack.c.l.b16 %v842
      %v1003 = vunpack.c.l.b16 %v843
      %v1004 = vunpack.c.l.b16 %v844
      %v1005 = vunpack.c.l.b16 %v845
      %v1006 = vunpack.c.l.b16 %v846
      %v1007 = vunpack.c.l.b16 %v847
      %v1008 = vunpack.c.l.b16 %v848
      %v1009 = vpack.c.b16 %v994, %v993
      %v1010 = vpack.c.b16 %v996, %v995
      %v1011 = vpack.c.b16 %v998, %v997
      %v1012 = vpack.c.b16 %v1000, %v999
      %v1013 = vpack.c.b16 %v1002, %v1001
      %v1014 = vpack.c.b16 %v1004, %v1003
      %v1015 = vpack.c.b16 %v1006, %v1005
      %v1016 = vpack.c.b16 %v1008, %v1007
      %1025 = vmatprep.subr.bf16.mxu0 0
      %1026 = vmatpush1.bf16.msra.mxu0 %v1009
      %1027 = vmatprep.subr.bf16.mxu0 0
      %1028 = vmatpush1.bf16.msra.mxu0 %v1010
      %1029 = vmatprep.subr.bf16.mxu0 0
      %1030 = vmatpush1.bf16.msra.mxu0 %v1011
      %1031 = vmatprep.subr.bf16.mxu0 0
      %1032 = vmatpush1.bf16.msra.mxu0 %v1012
      %1033 = vmatprep.subr.bf16.mxu0 0
      %1034 = vmatpush1.bf16.msra.mxu0 %v1013
      %1035 = vmatprep.subr.bf16.mxu0 0
      %1036 = vmatpush1.bf16.msra.mxu0 %v1014
      %1037 = vmatprep.subr.bf16.mxu0 0
      %1038 = vmatpush1.bf16.msra.mxu0 %v1015
      %1039 = vmatprep.subr.bf16.mxu0 0
      %1040 = vmatpush1.bf16.msra.mxu0 %v1016
      %1041 = vmatprep.subr.bf16.mxu0 0
      %1042 = vmatpush1.bf16.msra.mxu0 0
      %1043 = vmatprep.subr.bf16.mxu0 0
      %1044 = vmatpush1.bf16.msra.mxu0 0
      %1045 = vmatprep.subr.bf16.mxu0 0
      %1046 = vmatpush1.bf16.msra.mxu0 0
      %1047 = vmatprep.subr.bf16.mxu0 0
      %1048 = vmatpush1.bf16.msra.mxu0 0
      %1049 = vmatprep.subr.bf16.mxu0 0
      %1050 = vmatpush1.bf16.msra.mxu0 0
      %1051 = vmatprep.subr.bf16.mxu0 0
      %1052 = vmatpush1.bf16.msra.mxu0 0
      %1053 = vmatprep.subr.bf16.mxu0 0
      %1054 = vmatpush1.bf16.msra.mxu0 0
      %1055 = vmatprep.subr.bf16.mxu0 0
      %1056 = vmatpush1.bf16.msra.mxu0 0
      %1057 = vmatprep.mubr.bf16.mxu0 0
      %1058 = vmatmul.mubr.bf16.gmra.mrb[0].mxu0 %v505
      %v1059 = vpop.f32.mrb[0].mxu0
      %v1060 = vadd.f32 0.0, %v1059
      %v1061 = vpop.f32.mrb[0].mxu0
      %v1062 = vpop.f32.mrb[0].mxu0
      %v1063 = vadd.f32 0.0, %v1062
      %v1064 = vpop.f32.mrb[0].mxu0
      %1065 = vmatprep.mubr.bf16.mxu0 0
      %1066 = vmatmul.mubr.bf16.gmra.mrb[0].mxu0 %v506
      %v1067 = vpop.f32.mrb[0].mxu0
      %v1068 = vadd.f32 0.0, %v1067
      %v1069 = vpop.f32.mrb[0].mxu0
      %v1070 = vpop.f32.mrb[0].mxu0
      %v1071 = vpop.f32.mrb[0].mxu0
      %1072 = vdwg.mxu0
      %v1089 = vunpack.c.l.b16 %v849
      %v1090 = vunpack.c.l.b16 %v850
      %v1091 = vunpack.c.l.b16 %v851
      %v1092 = vunpack.c.l.b16 %v852
      %v1093 = vunpack.c.l.b16 %v853
      %v1094 = vunpack.c.l.b16 %v854
      %v1095 = vunpack.c.l.b16 %v855
      %v1096 = vunpack.c.l.b16 %v856
      %v1097 = vunpack.c.l.b16 %v857
      %v1098 = vunpack.c.l.b16 %v858
      %v1099 = vunpack.c.l.b16 %v859
      %v1100 = vunpack.c.l.b16 %v860
      %v1101 = vunpack.c.l.b16 %v861
      %v1102 = vunpack.c.l.b16 %v862
      %v1103 = vunpack.c.l.b16 %v863
      %v1104 = vunpack.c.l.b16 %v864
      %v1105 = vpack.c.b16 %v1090, %v1089
      %v1106 = vpack.c.b16 %v1092, %v1091
      %v1107 = vpack.c.b16 %v1094, %v1093
      %v1108 = vpack.c.b16 %v1096, %v1095
      %v1109 = vpack.c.b16 %v1098, %v1097
      %v1110 = vpack.c.b16 %v1100, %v1099
      %v1111 = vpack.c.b16 %v1102, %v1101
      %v1112 = vpack.c.b16 %v1104, %v1103
      %1121 = vmatprep.subr.bf16.mxu0 0
      %1122 = vmatpush1.bf16.msra.mxu0 %v1105
      %1123 = vmatprep.subr.bf16.mxu0 0
      %1124 = vmatpush1.bf16.msra.mxu0 %v1106
      %1125 = vmatprep.subr.bf16.mxu0 0
      %1126 = vmatpush1.bf16.msra.mxu0 %v1107
      %1127 = vmatprep.subr.bf16.mxu0 0
      %1128 = vmatpush1.bf16.msra.mxu0 %v1108
      %1129 = vmatprep.subr.bf16.mxu0 0
      %1130 = vmatpush1.bf16.msra.mxu0 %v1109
      %1131 = vmatprep.subr.bf16.mxu0 0
      %1132 = vmatpush1.bf16.msra.mxu0 %v1110
      %1133 = vmatprep.subr.bf16.mxu0 0
      %1134 = vmatpush1.bf16.msra.mxu0 %v1111
      %1135 = vmatprep.subr.bf16.mxu0 0
      %1136 = vmatpush1.bf16.msra.mxu0 %v1112
      %1137 = vmatprep.subr.bf16.mxu0 0
      %1138 = vmatpush1.bf16.msra.mxu0 0
      %1139 = vmatprep.subr.bf16.mxu0 0
      %1140 = vmatpush1.bf16.msra.mxu0 0
      %1141 = vmatprep.subr.bf16.mxu0 0
      %1142 = vmatpush1.bf16.msra.mxu0 0
      %1143 = vmatprep.subr.bf16.mxu0 0
      %1144 = vmatpush1.bf16.msra.mxu0 0
      %1145 = vmatprep.subr.bf16.mxu0 0
      %1146 = vmatpush1.bf16.msra.mxu0 0
      %1147 = vmatprep.subr.bf16.mxu0 0
      %1148 = vmatpush1.bf16.msra.mxu0 0
      %1149 = vmatprep.subr.bf16.mxu0 0
      %1150 = vmatpush1.bf16.msra.mxu0 0
      %1151 = vmatprep.subr.bf16.mxu0 0
      %1152 = vmatpush1.bf16.msra.mxu0 0
      %1153 = vmatprep.mubr.bf16.mxu0 0
      %1154 = vmatmul.mubr.bf16.gmra.mrb[0].mxu0 %v611
      %v1155 = vpop.f32.mrb[0].mxu0
      %v1156 = vadd.f32 0.0, %v1155
      %v1157 = vpop.f32.mrb[0].mxu0
      %v1158 = vpop.f32.mrb[0].mxu0
      %v1159 = vadd.f32 0.0, %v1158
      %v1160 = vpop.f32.mrb[0].mxu0
      %1161 = vmatprep.mubr.bf16.mxu0 0
      %1162 = vmatmul.mubr.bf16.gmra.mrb[0].mxu0 %v612
      %v1163 = vpop.f32.mrb[0].mxu0
      %v1164 = vadd.f32 0.0, %v1163
      %v1165 = vpop.f32.mrb[0].mxu0
      %v1166 = vpop.f32.mrb[0].mxu0
      %v1167 = vpop.f32.mrb[0].mxu0
      %1168 = vdwg.mxu0
      %v1185 = vunpack.c.l.b16 %v865
      %v1186 = vunpack.c.l.b16 %v866
      %v1187 = vunpack.c.l.b16 %v867
      %v1188 = vunpack.c.l.b16 %v868
      %v1189 = vunpack.c.l.b16 %v869
      %v1190 = vunpack.c.l.b16 %v870
      %v1191 = vunpack.c.l.b16 %v871
      %v1192 = vunpack.c.l.b16 %v872
      %v1193 = vunpack.c.l.b16 %v873
      %v1194 = vunpack.c.l.b16 %v874
      %v1195 = vunpack.c.l.b16 %v875
      %v1196 = vunpack.c.l.b16 %v876
      %v1197 = vunpack.c.l.b16 %v877
      %v1198 = vunpack.c.l.b16 %v878
      %v1199 = vunpack.c.l.b16 %v879
      %v1200 = vunpack.c.l.b16 %v880
      %v1201 = vpack.c.b16 %v1186, %v1185
      %v1202 = vpack.c.b16 %v1188, %v1187
      %v1203 = vpack.c.b16 %v1190, %v1189
      %v1204 = vpack.c.b16 %v1192, %v1191
      %v1205 = vpack.c.b16 %v1194, %v1193
      %v1206 = vpack.c.b16 %v1196, %v1195
      %v1207 = vpack.c.b16 %v1198, %v1197
      %v1208 = vpack.c.b16 %v1200, %v1199
      %1217 = vmatprep.subr.bf16.mxu0 0
      %1218 = vmatpush1.bf16.msra.mxu0 %v1201
      %1219 = vmatprep.subr.bf16.mxu0 0
      %1220 = vmatpush1.bf16.msra.mxu0 %v1202
      %1221 = vmatprep.subr.bf16.mxu0 0
      %1222 = vmatpush1.bf16.msra.mxu0 %v1203
      %1223 = vmatprep.subr.bf16.mxu0 0
      %1224 = vmatpush1.bf16.msra.mxu0 %v1204
      %1225 = vmatprep.subr.bf16.mxu0 0
      %1226 = vmatpush1.bf16.msra.mxu0 %v1205
      %1227 = vmatprep.subr.bf16.mxu0 0
      %1228 = vmatpush1.bf16.msra.mxu0 %v1206
      %1229 = vmatprep.subr.bf16.mxu0 0
      %1230 = vmatpush1.bf16.msra.mxu0 %v1207
      %1231 = vmatprep.subr.bf16.mxu0 0
      %1232 = vmatpush1.bf16.msra.mxu0 %v1208
      %1233 = vmatprep.subr.bf16.mxu0 0
      %1234 = vmatpush1.bf16.msra.mxu0 0
      %1235 = vmatprep.subr.bf16.mxu0 0
      %1236 = vmatpush1.bf16.msra.mxu0 0
      %1237 = vmatprep.subr.bf16.mxu0 0
      %1238 = vmatpush1.bf16.msra.mxu0 0
      %1239 = vmatprep.subr.bf16.mxu0 0
      %1240 = vmatpush1.bf16.msra.mxu0 0
      %1241 = vmatprep.subr.bf16.mxu0 0
      %1242 = vmatpush1.bf16.msra.mxu0 0
      %1243 = vmatprep.subr.bf16.mxu0 0
      %1244 = vmatpush1.bf16.msra.mxu0 0
      %1245 = vmatprep.subr.bf16.mxu0 0
      %1246 = vmatpush1.bf16.msra.mxu0 0
      %1247 = vmatprep.subr.bf16.mxu0 0
      %1248 = vmatpush1.bf16.msra.mxu0 0
      %1249 = vmatprep.mubr.bf16.mxu0 0
      %1250 = vmatmul.mubr.bf16.gmra.mrb[0].mxu0 %v717
      %v1251 = vpop.f32.mrb[0].mxu0
      %v1252 = vadd.f32 0.0, %v1251
      %v1253 = vpop.f32.mrb[0].mxu0
      %v1254 = vpop.f32.mrb[0].mxu0
      %v1255 = vadd.f32 0.0, %v1254
      %v1256 = vpop.f32.mrb[0].mxu0
      %1257 = vmatprep.mubr.bf16.mxu0 0
      %1258 = vmatmul.mubr.bf16.gmra.mrb[0].mxu0 %v718
      %v1259 = vpop.f32.mrb[0].mxu0
      %v1260 = vadd.f32 0.0, %v1259
      %v1261 = vpop.f32.mrb[0].mxu0
      %v1262 = vpop.f32.mrb[0].mxu0
      %v1263 = vpop.f32.mrb[0].mxu0
      %1264 = vdwg.mxu0
      %v1265 = vld [vmem:[%s296] sm:$0xff]
      %v1266 = vld [vmem:[%s296 + $0x8] sm:$0xff]
      %v1267 = vld [vmem:[%s296 + $0x10] sm:$0x1]
      %v1268 = vld [vmem:[%s302] sm:$0xff]
      %v1269 = vld [vmem:[%s302 + $0x8] sm:$0xff]
      %v1270 = vld [vmem:[%s302 + $0x10] sm:$0x1]
      %v1271 = vmul.f32 %v486, %v1265
      %v1272 = vmul.f32 %v489, %v1266
      %v1273 = vmul.f32 %v494, %v1267
      %v1274 = vmul.f32 %v592, %v1265
      %v1275 = vmul.f32 %v595, %v1266
      %v1276 = vmul.f32 %v600, %v1267
      %v1277 = vmul.f32 %v698, %v1265
      %v1278 = vmul.f32 %v701, %v1266
      %v1279 = vmul.f32 %v706, %v1267
      %v1280 = vmul.f32 %v804, %v1265
      %v1281 = vmul.f32 %v807, %v1266
      %v1282 = vmul.f32 %v812, %v1267
      %v1283 = vmul.f32 %v964, %v1268
      %v1284 = vmul.f32 %v967, %v1269
      %v1285 = vmul.f32 %v972, %v1270
      %v1286 = vmul.f32 %v1060, %v1268
      %v1287 = vmul.f32 %v1063, %v1269
      %v1288 = vmul.f32 %v1068, %v1270
      %v1289 = vmul.f32 %v1156, %v1268
      %v1290 = vmul.f32 %v1159, %v1269
      %v1291 = vmul.f32 %v1164, %v1270
      %v1292 = vmul.f32 %v1252, %v1268
      %v1293 = vmul.f32 %v1255, %v1269
      %v1294 = vmul.f32 %v1260, %v1270
      %v1295 = vadd.f32 %v1271, %v1283
      %v1296 = vadd.f32 %v1272, %v1284
      %v1297 = vadd.f32 %v1273, %v1285
      %v1298 = vadd.f32 %v1274, %v1286
      %v1299 = vadd.f32 %v1275, %v1287
      %v1300 = vadd.f32 %v1276, %v1288
      %v1301 = vadd.f32 %v1277, %v1289
      %v1302 = vadd.f32 %v1278, %v1290
      %v1303 = vadd.f32 %v1279, %v1291
      %v1304 = vadd.f32 %v1280, %v1292
      %v1305 = vadd.f32 %v1281, %v1293
      %v1306 = vadd.f32 %v1282, %v1294
      %v1307 = vpack.c.bf16 %v1296, %v1295
      %v1308 = vpack.c.bf16 %v1297, %v1297
      %v1309 = vpack.c.bf16 %v1299, %v1298
      %v1310 = vpack.c.bf16 %v1300, %v1300
      %v1311 = vpack.c.bf16 %v1302, %v1301
      %v1312 = vpack.c.bf16 %v1303, %v1303
      %v1313 = vpack.c.bf16 %v1305, %v1304
      %v1314 = vpack.c.bf16 %v1306, %v1306
      %v1323 = vunpack.c.l.b16 %v1307
      %v1324 = vunpack.c.h.b16 %v1307
      %v1325 = vunpack.c.l.b16 %v1308
      %v1326 = vunpack.c.l.b16 %v1309
      %v1327 = vunpack.c.h.b16 %v1309
      %v1328 = vunpack.c.l.b16 %v1310
      %v1329 = vunpack.c.l.b16 %v1311
      %v1330 = vunpack.c.h.b16 %v1311
      %v1331 = vunpack.c.l.b16 %v1312
      %v1332 = vunpack.c.l.b16 %v1313
      %v1333 = vunpack.c.h.b16 %v1313
      %v1334 = vunpack.c.l.b16 %v1314
      %v1335 = vpack.c.b16 %v1323, %v1323
      %v1336 = vpack.c.b16 %v1324, %v1324
      %v1337 = vpack.c.b16 %v1325, %v1325
      %v1338 = vpack.c.b16 %v1326, %v1326
      %v1339 = vpack.c.b16 %v1327, %v1327
      %v1340 = vpack.c.b16 %v1328, %v1328
      %v1341 = vpack.c.b16 %v1329, %v1329
      %v1342 = vpack.c.b16 %v1330, %v1330
      %v1343 = vpack.c.b16 %v1331, %v1331
      %v1344 = vpack.c.b16 %v1332, %v1332
      %v1345 = vpack.c.b16 %v1333, %v1333
      %v1346 = vpack.c.b16 %v1334, %v1334
      %1359 = vst [vmem:[%s313] sm:$0xf] %v1335
      %1360 = vst [vmem:[%s313 + $0x4] sm:$0xf] %v1336
      %vm1361 = vcmask 1040384
      %vm1362 = vsmask.f32 256
      %vm1363 = vmand %vm1361, %vm1362
      %v1364 = vld [vmem:[%s313 + $0x8] sm:$0x1]
      %v1365 = vsel %vm1363, %v1337, %v1364
      %1366 = vst [vmem:[%s313 + $0x8] sm:$0x1] %v1365
      %1367 = vst [vmem:[%s313 + $0xc] sm:$0xf] %v1338
      %1368 = vst [vmem:[%s313 + $0x10] sm:$0xf] %v1339
      %v1369 = vld [vmem:[%s313 + $0x14] sm:$0x1]
      %v1370 = vsel %vm1363, %v1340, %v1369
      %1371 = vst [vmem:[%s313 + $0x14] sm:$0x1] %v1370
      %1372 = vst [vmem:[%s313 + $0x18] sm:$0xf] %v1341
      %1373 = vst [vmem:[%s313 + $0x1c] sm:$0xf] %v1342
      %v1374 = vld [vmem:[%s313 + $0x20] sm:$0x1]
      %v1375 = vsel %vm1363, %v1343, %v1374
      %1376 = vst [vmem:[%s313 + $0x20] sm:$0x1] %v1375
      %1377 = vst [vmem:[%s313 + $0x24] sm:$0xf] %v1344
      %1378 = vst [vmem:[%s313 + $0x28] sm:$0xf] %v1345
      %v1379 = vld [vmem:[%s313 + $0x2c] sm:$0x1]
      %v1380 = vsel %vm1363, %v1346, %v1379
      %1381 = vst [vmem:[%s313 + $0x2c] sm:$0x1] %v1380
      %s1382 = smul.u32 4, %s21
      %s1383 = smul.u32 3, %s20
      %p1384 = scmp.lt.s32.totalorder %s1382, 7
      %s1385 = scalar_select %p1384, %s1382, 7
      %p1386 = scmp.lt.s32.totalorder %s1383, 2
      %s1387 = scalar_select %p1386, %s1383, 2
      %s1388 = smul.addr %s1385, 3
      %s1389 = sadd.s32 %s1387, %s1388
      %s1390 = smul.addr %s1389, 4
      %s1391 = scalar_lea.vmem %s5, %s1390
      // Predicated region
      $region41: #{flat_video_rope.1} parent=39 // pred_check
        %p1392 = pneg %p170
      $region42: #{flat_video_rope.1} parent=39 // pred_check_branch
        %1394 = sbr.rel (%p1392) target = $region44
      $region43: #{flat_video_rope.1} parent=39 // pred_region
        %s1395 = smul.u32 4, %s21
        %s1396 = smul.u32 3, %s20
      $region44: #{flat_video_rope.1} parent=39 // pred_fallthru
        _
    $region40: #{flat_video_rope.1} parent=5 // pred_fallthru
      _
    %p1397 = scmp.le.s32.totalorder 2, %s11
    // Predicated region
    $region45: #{flat_video_rope.1} parent=5 // pred_check
      %p1398 = pneg %p1397
    $region46: #{flat_video_rope.1} parent=5 // pred_check_branch
      %1400 = sbr.rel (%p1398) target = $region48
    $region47: #{flat_video_rope.1} parent=5 // pred_region
      %s1401 = ssub.s32 %s11, 2
      // Predicated region
      $region49: #{flat_video_rope.1} parent=47 // pred_check
        %p1402 = pneg %p176
      $region50: #{flat_video_rope.1} parent=47 // pred_check_branch
        %1404 = sbr.rel (%p1402) target = $region52
      $region51: #{flat_video_rope.1} parent=47 // pred_region
        %s1405 = smul.u32 4, %s23
        %s1406 = smul.u32 3, %s22
        %p1407 = scmp.lt.s32.totalorder %s1405, 7
        %s1408 = scalar_select %p1407, %s1405, 7
        %p1409 = scmp.lt.s32.totalorder %s1406, 2
        %s1410 = scalar_select %p1409, %s1406, 2
        %s1411 = smul.addr %s1408, 3
        %s1412 = sadd.s32 %s1410, %s1411
        %s1413 = smul.addr %s1412, 4
        %s1414 = scalar_lea.vmem %s5, %s1413
      $region52: #{flat_video_rope.1} parent=47 // pred_fallthru
        _
    $region48: #{flat_video_rope.1} parent=5 // pred_fallthru
      _
  $region6: #{flat_video_rope.1} parent=0 // loop_footer
    %s15 = sadd.s32 1, %s11
  $region7: #{flat_video_rope.1} parent=0 // loop_footer_branch
    %10 = sbr.rel target = $region3
  $region8: #{flat_video_rope.1} parent=0 // loop_exit
    _

</llo_original>
